<compile_context>
chip_gen: v5e
topology: v5e:2x2
jax: 0.10.0
libtpu: 0.0.40
codegen_flags: <defaults>
</compile_context>

<pallas_src>
import math
import functools

import jax
import jax.numpy as jnp
from jax.experimental import pallas as pl
from jax.experimental.pallas import tpu as pltpu


def _fast_self_attention_kernel(x_ref, maskT_ref,
                                wqk_ref, bqk_ref,
                                wka_ref, bka_ref,
                                wt_ref, bt_ref,
                                out_ref, *, batch_tile, num_heads, head_dim):
    BtS, H = x_ref.shape
    Bt = batch_tile
    S = BtS // Bt
    h = num_heads

    x2 = x_ref[...]                               # (Bt*S, H) bf16
    maskT = maskT_ref[...]                        # (Bt, S, 1) f32 additive mask

    # head -> feature one-hot selector built in-kernel (no input DMA / resident
    # buffer).  Built with comparisons (no integer division).
    feat = jax.lax.broadcasted_iota(jnp.int32, (h, H), 1)
    head_start = jax.lax.broadcasted_iota(jnp.int32, (h, H), 0) * head_dim
    e_mat = ((feat >= head_start) & (feat < head_start + head_dim)).astype(jnp.bfloat16)

    def softmax_over_seq(scores):                 # (Bt, S, h) f32, softmax over S
        m = jnp.max(scores, axis=1, keepdims=True)
        e = jnp.exp(scores - m)
        return e * pl.reciprocal(jnp.sum(e, axis=1, keepdims=True), approx=True)

    # ---- single fused projection: [ q | k | query-att scores ] -------------
    proj = (jnp.dot(x2, wqk_ref[...], preferred_element_type=jnp.float32)
            + bqk_ref[...])                       # (Bt*S, 2H + h) f32
    qf = proj[:, :H]                              # mixed_query_layer (f32)
    kf = proj[:, H:2 * H]                         # mixed_key_layer
    qs = proj[:, 2 * H:]                          # query scores (pre-scaled)
    q3 = qf.reshape(Bt, S, H)

    # ---- query attention pooling: one-hot expand + VPU mul + XLU S-reduce --
    qw = softmax_over_seq(qs.reshape(Bt, S, h) + maskT)              # (Bt, S, h)
    qw_exp = jnp.dot(qw.reshape(BtS, h).astype(jnp.bfloat16), e_mat,
                     preferred_element_type=jnp.float32)             # (Bt*S, H)
    pooled_q = jnp.sum(qw_exp.reshape(Bt, S, H) * q3,
                       axis=1, keepdims=True)                        # (Bt, 1, H)

    # ---- key attention pooling ----------------------------------------------
    qk3 = kf.reshape(Bt, S, H) * pooled_q                            # (Bt, S, H) f32
    ks = (jnp.dot(qk3.reshape(BtS, H).astype(jnp.bfloat16), wka_ref[...],
                  preferred_element_type=jnp.float32)
          + bka_ref[...])                                            # (Bt*S, h) pre-scaled
    kw = softmax_over_seq(ks.reshape(Bt, S, h) + maskT)              # (Bt, S, h)
    kw_exp = jnp.dot(kw.reshape(BtS, h).astype(jnp.bfloat16), e_mat,
                     preferred_element_type=jnp.float32)             # (Bt*S, H)
    pooled_k = jnp.sum(kw_exp.reshape(Bt, S, H) * qk3,
                       axis=1, keepdims=True)                        # (Bt, 1, H)

    # ---- value path + output transform + residual (kept in f32) ------------
    wv2 = (pooled_k * q3).reshape(BtS, H).astype(jnp.bfloat16)
    out = (jnp.dot(wv2, wt_ref[...], preferred_element_type=jnp.float32)
           + bt_ref[...] + qf)
    out_ref[...] = out.astype(out_ref.dtype)


def _vmem_capacity_bytes():
    """Per-core VMEM capacity (generation-aware), with a conservative fallback."""
    try:
        cap = getattr(pltpu.get_tpu_info(), "vmem_capacity_bytes", None)
        if cap:
            return int(cap)
    except Exception:
        pass
    return 64 * 1024 * 1024      # v7x per-TC size (smallest of current gens)


def _pick_batch_tile(B, S, H, n_heads, *, target_rows=512, vmem_budget_bytes=48 << 20):
    """Largest batch tile Bt that divides B and fits the VMEM budget, preferring
    (a) enough Bt*S rows to fill the MXU M dim, (b) an even number of grid blocks
    so v7x's two TensorCores split the batch evenly, (c) the largest tile."""
    per_b = S * ((8 * H + n_heads) * 4     # f32 proj slab (2H+h) + ~6 (S,H) f32 slabs
                 + 2 * H * 2               # double-buffered bf16 input block
                 + 2 * H * 4)              # double-buffered f32 output block
    max_bt = max(1, vmem_budget_bytes // max(per_b, 1))
    candidates = [c for c in range(1, B + 1) if B % c == 0 and c <= max_bt] or [1]

    def score(c):
        return (c * S >= target_rows, (B // c) % 2 == 0, c)

    return max(candidates, key=score)


def fast_self_attention(hidden_states, attention_mask, params, num_heads, *,
                        out_dtype=jnp.float32):
    """hidden_states: (B, S, H) f32; attention_mask: (B, 1, S) f32 additive mask.
    Set out_dtype=jnp.bfloat16 to halve HBM writeback if the consumer allows it."""
    B, S, H = hidden_states.shape
    h = num_heads
    head_dim = H // h
    scale = 1.0 / math.sqrt(head_dim)
    f32 = jnp.float32
    compute_dtype = jnp.bfloat16   # MXU inputs; accumulation and elementwise stay f32

    Wq = params["Wq"].astype(f32); Wk = params["Wk"].astype(f32)
    Wqa = params["Wqa"].astype(f32); Wka = params["Wka"].astype(f32)
    Wt = params["Wt"].astype(f32)
    bq = params["bq"].astype(f32); bk = params["bk"].astype(f32)
    bqa = params["bqa"].astype(f32); bka = params["bka"].astype(f32)

    # Fused [Wq.T | Wk.T | (Wq.T @ Wqa.T) * scale] — composed in f32, cast once.
    w_qs = (Wq.T @ Wqa.T) * scale                                    # (H, h)
    b_qs = (bq @ Wqa.T + bqa) * scale                                # (h,)
    wqk = jnp.concatenate([Wq.T, Wk.T, w_qs], axis=1).astype(compute_dtype)   # (H, 2H+h)
    bqk = jnp.concatenate([bq, bk, b_qs]).reshape(1, 2 * H + h).astype(f32)
    wka = (Wka.T * scale).astype(compute_dtype)                      # (H, h)
    bka_b = (bka * scale).reshape(1, h).astype(f32)
    wt = Wt.T.astype(compute_dtype)                                  # (H, H)
    bt_b = params["bt"].reshape(1, H).astype(f32)

    # Generation-aware VMEM budgeting (≈48 MiB on v7x, ≈96 MiB on v5e/v6e).
    vmem_limit = int(_vmem_capacity_bytes() * 3 // 4)
    weight_bytes = (wqk.size + wka.size + wt.size) * 2 + (bqk.size + bka_b.size + bt_b.size) * 4
    tile_budget = max(vmem_limit - 2 * weight_bytes - (4 << 20), 1 << 20)

    bt = _pick_batch_tile(B, S, H, h, target_rows=512, vmem_budget_bytes=tile_budget)
    n_blocks = B // bt

    # Flatten batch*seq wrapper-side so the kernel sees lane-dense 2D row blocks;
    # mask is passed as (B, S, 1) so in-kernel softmax needs no transposes.
    x2 = hidden_states.reshape(B * S, H).astype(compute_dtype)
    maskT = jnp.swapaxes(attention_mask.astype(f32), 1, 2)           # (B, S, 1)

    const = lambda *shape: pl.BlockSpec(shape, lambda b: (0,) * len(shape))
    kernel = functools.partial(_fast_self_attention_kernel,
                               batch_tile=bt, num_heads=h, head_dim=head_dim)

    out2 = pl.pallas_call(
        kernel,
        out_shape=jax.ShapeDtypeStruct((B * S, H), out_dtype),
        grid=(n_blocks,),
        in_specs=[
            pl.BlockSpec((bt * S, H), lambda b: (b, 0)),      # hidden rows (bf16)
            pl.BlockSpec((bt, S, 1), lambda b: (b, 0, 0)),    # additive mask (f32)
            const(H, 2 * H + h), const(1, 2 * H + h),         # fused Wqk|score, bias
            const(H, h), const(1, h),                         # Wka, bka (pre-scaled)
            const(H, H), const(1, H),                         # Wt, bt
        ],
        out_specs=pl.BlockSpec((bt * S, H), lambda b: (b, 0)),
        compiler_params=pltpu.CompilerParams(
            dimension_semantics=("parallel",),                # batch tiles independent
            vmem_limit_bytes=vmem_limit,
        ),
    )(x2, maskT, wqk, bqk, wka, bka_b, wt, bt_b)
    return out2.reshape(B, S, H)


def fast_self_attention_reference(x, mask, params, num_heads):
    """Pure-JAX (f32) re-implementation of the PyTorch forward (for verification)."""
    B, S, H = x.shape
    d = H // num_heads
    q = x @ params["Wq"].T + params["bq"]
    k = x @ params["Wk"].T + params["bk"]
    qs = jnp.swapaxes(q @ params["Wqa"].T + params["bqa"], 1, 2) / math.sqrt(d)  # (B,h,S)
    qs = qs + mask
    qw = jax.nn.softmax(qs, axis=-1)
    ql = q.reshape(B, S, num_heads, d).transpose(0, 2, 1, 3)                     # (B,h,S,d)
    pooled_q = jnp.einsum("bhs,bhsd->bhd", qw, ql).reshape(B, 1, H)
    qk = k * pooled_q
    kscore = jnp.swapaxes(qk @ params["Wka"].T + params["bka"], 1, 2) / math.sqrt(d)
    kscore = kscore + mask
    kw = jax.nn.softmax(kscore, axis=-1)
    kl = qk.reshape(B, S, num_heads, d).transpose(0, 2, 1, 3)
    pooled_k = jnp.einsum("bhs,bhsd->bhd", kw, kl)                               # (B,h,d)
    wv = pooled_k[:, :, None, :] * ql                                            # (B,h,S,d)
    wv = wv.transpose(0, 2, 1, 3).reshape(B, S, H)
    return wv @ params["Wt"].T + params["bt"] + q


if __name__ == "__main__":
    B, S, H, num_heads = 2, 8, 32, 4
    std = 0.2

    key = jax.random.PRNGKey(0)
    keys = jax.random.split(key, 8)
    params = {
        "Wq": std * jax.random.normal(keys[0], (H, H), jnp.float32),
        "bq": jnp.zeros((H,), jnp.float32),
        "Wk": std * jax.random.normal(keys[1], (H, H), jnp.float32),
        "bk": jnp.zeros((H,), jnp.float32),
        "Wqa": std * jax.random.normal(keys[2], (num_heads, H), jnp.float32),
        "bqa": jnp.zeros((num_heads,), jnp.float32),
        "Wka": std * jax.random.normal(keys[3], (num_heads, H), jnp.float32),
        "bka": jnp.zeros((num_heads,), jnp.float32),
        "Wt": std * jax.random.normal(keys[4], (H, H), jnp.float32),
        "bt": jnp.zeros((H,), jnp.float32),
    }

    hidden_states = jax.random.normal(keys[5], (B, S, H), jnp.float32)
    # additive attention mask (B, 1, S): batch 0 full length, batch 1 masks last 2 tokens
    lengths = jnp.array([S, S - 2])
    valid = jnp.arange(S)[None, :] < lengths[:, None]                 # (B, S)
    attention_mask = jnp.where(valid, 0.0, -10000.0)[:, None, :].astype(jnp.float32)

    out = fast_self_attention(hidden_states, attention_mask, params, num_heads)
    out = jax.block_until_ready(out)

    ref = fast_self_attention_reference(hidden_states, attention_mask, params, num_heads)
    assert out.shape == (B, S, H)
    # bf16 MXU inputs + approx reciprocal -> compare against the f32 reference
    # with a bf16-appropriate tolerance.
    max_err = jnp.max(jnp.abs(out - ref))
    assert jnp.allclose(out, ref, rtol=5e-2, atol=5e-2), f"max abs err {max_err}"

    print("KERNEL_OK")
</pallas_src>

<mosaic_0001>
module attributes {stable_mosaic.version = 11 : i64} {
  func.func @_fast_self_attention_kernel(%arg0: i32, %arg1: memref<8x32xbf16, #tpu.memory_space<vmem>>, %arg2: memref<1x8x1xf32, #tpu.memory_space<vmem>>, %arg3: memref<32x68xbf16, #tpu.memory_space<vmem>>, %arg4: memref<1x68xf32, #tpu.memory_space<vmem>>, %arg5: memref<32x4xbf16, #tpu.memory_space<vmem>>, %arg6: memref<1x4xf32, #tpu.memory_space<vmem>>, %arg7: memref<32x32xbf16, #tpu.memory_space<vmem>>, %arg8: memref<1x32xf32, #tpu.memory_space<vmem>>, %arg9: memref<8x32xf32, #tpu.memory_space<vmem>>) attributes {dimension_semantics = [#tpu.dimension_semantics<parallel>], iteration_bounds = array<i64: 2>, scalar_prefetch = 0 : i64, scratch_operands = 0 : i64, tpu.core_type = #tpu.core_type<tc>, window_params = [{transform_indices = @transform_0, window_bounds = array<i64: 8, 32>}, {transform_indices = @transform_1, window_bounds = array<i64: 1, 8, 1>}, {pipeline_mode = #tpu.pipeline_mode<synchronous>, transform_indices = @transform_2, window_bounds = array<i64: 32, 68>}, {pipeline_mode = #tpu.pipeline_mode<synchronous>, transform_indices = @transform_3, window_bounds = array<i64: 1, 68>}, {pipeline_mode = #tpu.pipeline_mode<synchronous>, transform_indices = @transform_4, window_bounds = array<i64: 32, 4>}, {pipeline_mode = #tpu.pipeline_mode<synchronous>, transform_indices = @transform_5, window_bounds = array<i64: 1, 4>}, {pipeline_mode = #tpu.pipeline_mode<synchronous>, transform_indices = @transform_6, window_bounds = array<i64: 32, 32>}, {pipeline_mode = #tpu.pipeline_mode<synchronous>, transform_indices = @transform_7, window_bounds = array<i64: 1, 32>}, {transform_indices = @transform_8, window_bounds = array<i64: 8, 32>}]} {
    %c0 = arith.constant 0 : index
    %c0_0 = arith.constant 0 : index
    %0 = vector.load %arg1[%c0, %c0_0] : memref<8x32xbf16, #tpu.memory_space<vmem>>, vector<8x32xbf16>
    %c0_1 = arith.constant 0 : index
    %c0_2 = arith.constant 0 : index
    %c0_3 = arith.constant 0 : index
    %1 = vector.load %arg2[%c0_1, %c0_2, %c0_3] : memref<1x8x1xf32, #tpu.memory_space<vmem>>, vector<1x8x1xf32>
    %2 = tpu.iota {dimensions = array<i32: 1>} : vector<4x32xi32>
    %3 = tpu.iota {dimensions = array<i32: 0>} : vector<4x32xi32>
    %c8_i32 = arith.constant 8 : i32
    %4 = vector.broadcast %c8_i32 : i32 to vector<4x32xi32>
    %5 = arith.muli %3, %4 : vector<4x32xi32>
    %6 = arith.cmpi sge, %2, %5 : vector<4x32xi32>
    %c8_i32_4 = arith.constant 8 : i32
    %7 = vector.broadcast %c8_i32_4 : i32 to vector<4x32xi32>
    %8 = arith.addi %5, %7 : vector<4x32xi32>
    %9 = arith.cmpi slt, %2, %8 : vector<4x32xi32>
    %10 = arith.andi %6, %9 : vector<4x32xi1>
    %11 = arith.extui %10 : vector<4x32xi1> to vector<4x32xi32>
    %12 = arith.sitofp %11 : vector<4x32xi32> to vector<4x32xf32>
    %13 = arith.truncf %12 : vector<4x32xf32> to vector<4x32xbf16>
    %c0_5 = arith.constant 0 : index
    %c0_6 = arith.constant 0 : index
    %14 = vector.load %arg3[%c0_5, %c0_6] : memref<32x68xbf16, #tpu.memory_space<vmem>>, vector<32x68xbf16>
    %cst = arith.constant dense<0.000000e+00> : vector<8x68xf32>
    %15 = tpu.matmul %0, %14, %cst {dimension_numbers = #tpu.dot_dimension_numbers<[1], [0], [0], [1], [0, 0, 1, 1], [], []>} : vector<8x32xbf16>, vector<32x68xbf16>, vector<8x68xf32> -> vector<8x68xf32>
    %c0_7 = arith.constant 0 : index
    %c0_8 = arith.constant 0 : index
    %16 = vector.load %arg4[%c0_7, %c0_8] : memref<1x68xf32, #tpu.memory_space<vmem>>, vector<1x68xf32>
    %17 = vector.broadcast %16 : vector<1x68xf32> to vector<8x68xf32>
    %18 = arith.addf %15, %17 : vector<8x68xf32>
    %19 = vector.extract_strided_slice %18 {offsets = [0, 0], sizes = [8, 32], strides = [1, 1]} : vector<8x68xf32> to vector<8x32xf32>
    %20 = vector.extract_strided_slice %18 {offsets = [0, 32], sizes = [8, 32], strides = [1, 1]} : vector<8x68xf32> to vector<8x32xf32>
    %21 = vector.extract_strided_slice %18 {offsets = [0, 64], sizes = [8, 4], strides = [1, 1]} : vector<8x68xf32> to vector<8x4xf32>
    %22 = vector.shape_cast %19 : vector<8x32xf32> to vector<1x8x32xf32>
    %23 = vector.shape_cast %21 : vector<8x4xf32> to vector<1x8x4xf32>
    %24 = vector.broadcast %1 : vector<1x8x1xf32> to vector<1x8x4xf32>
    %25 = arith.addf %23, %24 : vector<1x8x4xf32>
    %cst_9 = arith.constant dense<0xFF800000> : vector<1x4xf32>
    %26 = vector.multi_reduction <maximumf>, %25, %cst_9 [1] : vector<1x8x4xf32> to vector<1x4xf32>
    %27 = vector.shape_cast %26 : vector<1x4xf32> to vector<1x1x4xf32>
    %28 = vector.broadcast %27 : vector<1x1x4xf32> to vector<1x8x4xf32>
    %29 = arith.subf %25, %28 : vector<1x8x4xf32>
    %30 = math.exp %29 : vector<1x8x4xf32>
    %cst_10 = arith.constant dense<0.000000e+00> : vector<1x4xf32>
    %31 = vector.multi_reduction <add>, %30, %cst_10 [1] : vector<1x8x4xf32> to vector<1x4xf32>
    %32 = vector.shape_cast %31 : vector<1x4xf32> to vector<1x1x4xf32>
    %33 = tpu.reciprocal %32 {approx = true} : vector<1x1x4xf32> -> vector<1x1x4xf32>
    %34 = vector.broadcast %33 : vector<1x1x4xf32> to vector<1x8x4xf32>
    %35 = arith.mulf %30, %34 : vector<1x8x4xf32>
    %36 = vector.shape_cast %35 : vector<1x8x4xf32> to vector<8x4xf32>
    %37 = arith.truncf %36 : vector<8x4xf32> to vector<8x4xbf16>
    %cst_11 = arith.constant dense<0.000000e+00> : vector<8x32xf32>
    %38 = tpu.matmul %37, %13, %cst_11 {dimension_numbers = #tpu.dot_dimension_numbers<[1], [0], [0], [1], [0, 0, 1, 1], [], []>} : vector<8x4xbf16>, vector<4x32xbf16>, vector<8x32xf32> -> vector<8x32xf32>
    %39 = vector.shape_cast %38 : vector<8x32xf32> to vector<1x8x32xf32>
    %40 = arith.mulf %39, %22 : vector<1x8x32xf32>
    %cst_12 = arith.constant dense<0.000000e+00> : vector<1x32xf32>
    %41 = vector.multi_reduction <add>, %40, %cst_12 [1] : vector<1x8x32xf32> to vector<1x32xf32>
    %42 = vector.shape_cast %41 : vector<1x32xf32> to vector<1x1x32xf32>
    %43 = vector.shape_cast %20 : vector<8x32xf32> to vector<1x8x32xf32>
    %44 = vector.broadcast %42 : vector<1x1x32xf32> to vector<1x8x32xf32>
    %45 = arith.mulf %43, %44 : vector<1x8x32xf32>
    %46 = vector.shape_cast %45 : vector<1x8x32xf32> to vector<8x32xf32>
    %47 = arith.truncf %46 : vector<8x32xf32> to vector<8x32xbf16>
    %c0_13 = arith.constant 0 : index
    %c0_14 = arith.constant 0 : index
    %48 = vector.load %arg5[%c0_13, %c0_14] : memref<32x4xbf16, #tpu.memory_space<vmem>>, vector<32x4xbf16>
    %cst_15 = arith.constant dense<0.000000e+00> : vector<8x4xf32>
    %49 = tpu.matmul %47, %48, %cst_15 {dimension_numbers = #tpu.dot_dimension_numbers<[1], [0], [0], [1], [0, 0, 1, 1], [], []>} : vector<8x32xbf16>, vector<32x4xbf16>, vector<8x4xf32> -> vector<8x4xf32>
    %c0_16 = arith.constant 0 : index
    %c0_17 = arith.constant 0 : index
    %50 = vector.load %arg6[%c0_16, %c0_17] : memref<1x4xf32, #tpu.memory_space<vmem>>, vector<1x4xf32>
    %51 = vector.broadcast %50 : vector<1x4xf32> to vector<8x4xf32>
    %52 = arith.addf %49, %51 : vector<8x4xf32>
    %53 = vector.shape_cast %52 : vector<8x4xf32> to vector<1x8x4xf32>
    %54 = vector.broadcast %1 : vector<1x8x1xf32> to vector<1x8x4xf32>
    %55 = arith.addf %53, %54 : vector<1x8x4xf32>
    %cst_18 = arith.constant dense<0xFF800000> : vector<1x4xf32>
    %56 = vector.multi_reduction <maximumf>, %55, %cst_18 [1] : vector<1x8x4xf32> to vector<1x4xf32>
    %57 = vector.shape_cast %56 : vector<1x4xf32> to vector<1x1x4xf32>
    %58 = vector.broadcast %57 : vector<1x1x4xf32> to vector<1x8x4xf32>
    %59 = arith.subf %55, %58 : vector<1x8x4xf32>
    %60 = math.exp %59 : vector<1x8x4xf32>
    %cst_19 = arith.constant dense<0.000000e+00> : vector<1x4xf32>
    %61 = vector.multi_reduction <add>, %60, %cst_19 [1] : vector<1x8x4xf32> to vector<1x4xf32>
    %62 = vector.shape_cast %61 : vector<1x4xf32> to vector<1x1x4xf32>
    %63 = tpu.reciprocal %62 {approx = true} : vector<1x1x4xf32> -> vector<1x1x4xf32>
    %64 = vector.broadcast %63 : vector<1x1x4xf32> to vector<1x8x4xf32>
    %65 = arith.mulf %60, %64 : vector<1x8x4xf32>
    %66 = vector.shape_cast %65 : vector<1x8x4xf32> to vector<8x4xf32>
    %67 = arith.truncf %66 : vector<8x4xf32> to vector<8x4xbf16>
    %cst_20 = arith.constant dense<0.000000e+00> : vector<8x32xf32>
    %68 = tpu.matmul %67, %13, %cst_20 {dimension_numbers = #tpu.dot_dimension_numbers<[1], [0], [0], [1], [0, 0, 1, 1], [], []>} : vector<8x4xbf16>, vector<4x32xbf16>, vector<8x32xf32> -> vector<8x32xf32>
    %69 = vector.shape_cast %68 : vector<8x32xf32> to vector<1x8x32xf32>
    %70 = arith.mulf %69, %45 : vector<1x8x32xf32>
    %cst_21 = arith.constant dense<0.000000e+00> : vector<1x32xf32>
    %71 = vector.multi_reduction <add>, %70, %cst_21 [1] : vector<1x8x32xf32> to vector<1x32xf32>
    %72 = vector.shape_cast %71 : vector<1x32xf32> to vector<1x1x32xf32>
    %73 = vector.broadcast %72 : vector<1x1x32xf32> to vector<1x8x32xf32>
    %74 = arith.mulf %73, %22 : vector<1x8x32xf32>
    %75 = vector.shape_cast %74 : vector<1x8x32xf32> to vector<8x32xf32>
    %76 = arith.truncf %75 : vector<8x32xf32> to vector<8x32xbf16>
    %c0_22 = arith.constant 0 : index
    %c0_23 = arith.constant 0 : index
    %77 = vector.load %arg7[%c0_22, %c0_23] : memref<32x32xbf16, #tpu.memory_space<vmem>>, vector<32x32xbf16>
    %cst_24 = arith.constant dense<0.000000e+00> : vector<8x32xf32>
    %78 = tpu.matmul %76, %77, %cst_24 {dimension_numbers = #tpu.dot_dimension_numbers<[1], [0], [0], [1], [0, 0, 1, 1], [], []>} : vector<8x32xbf16>, vector<32x32xbf16>, vector<8x32xf32> -> vector<8x32xf32>
    %c0_25 = arith.constant 0 : index
    %c0_26 = arith.constant 0 : index
    %79 = vector.load %arg8[%c0_25, %c0_26] : memref<1x32xf32, #tpu.memory_space<vmem>>, vector<1x32xf32>
    %80 = vector.broadcast %79 : vector<1x32xf32> to vector<8x32xf32>
    %81 = arith.addf %78, %80 : vector<8x32xf32>
    %82 = arith.addf %81, %19 : vector<8x32xf32>
    %c0_27 = arith.constant 0 : index
    %c0_28 = arith.constant 0 : index
    %83 = vector.load %arg9[%c0_27, %c0_28] : memref<8x32xf32, #tpu.memory_space<vmem>>, vector<8x32xf32>
    tpu.vector_store %arg9[%c0_27, %c0_28], %82 {strides = array<i32>} : memref<8x32xf32, #tpu.memory_space<vmem>>, vector<8x32xf32>,
    return
  }
  func.func @transform_0(%arg0: i32) -> (i32, i32) {
    %c0_i32 = arith.constant 0 : i32
    %c0_i32_0 = arith.constant 0 : i32
    return %arg0, %c0_i32 : i32, i32
  }
  func.func @transform_1(%arg0: i32) -> (i32, i32, i32) {
    %c0_i32 = arith.constant 0 : i32
    %c0_i32_0 = arith.constant 0 : i32
    %c0_i32_1 = arith.constant 0 : i32
    return %arg0, %c0_i32, %c0_i32_0 : i32, i32, i32
  }
  func.func @transform_2(%arg0: i32) -> (i32, i32) {
    %c0_i32 = arith.constant 0 : i32
    %c0_i32_0 = arith.constant 0 : i32
    %c0_i32_1 = arith.constant 0 : i32
    return %c0_i32, %c0_i32_0 : i32, i32
  }
  func.func @transform_3(%arg0: i32) -> (i32, i32) {
    %c0_i32 = arith.constant 0 : i32
    %c0_i32_0 = arith.constant 0 : i32
    %c0_i32_1 = arith.constant 0 : i32
    return %c0_i32, %c0_i32_0 : i32, i32
  }
  func.func @transform_4(%arg0: i32) -> (i32, i32) {
    %c0_i32 = arith.constant 0 : i32
    %c0_i32_0 = arith.constant 0 : i32
    %c0_i32_1 = arith.constant 0 : i32
    return %c0_i32, %c0_i32_0 : i32, i32
  }
  func.func @transform_5(%arg0: i32) -> (i32, i32) {
    %c0_i32 = arith.constant 0 : i32
    %c0_i32_0 = arith.constant 0 : i32
    %c0_i32_1 = arith.constant 0 : i32
    return %c0_i32, %c0_i32_0 : i32, i32
  }
  func.func @transform_6(%arg0: i32) -> (i32, i32) {
    %c0_i32 = arith.constant 0 : i32
    %c0_i32_0 = arith.constant 0 : i32
    %c0_i32_1 = arith.constant 0 : i32
    return %c0_i32, %c0_i32_0 : i32, i32
  }
  func.func @transform_7(%arg0: i32) -> (i32, i32) {
    %c0_i32 = arith.constant 0 : i32
    %c0_i32_0 = arith.constant 0 : i32
    %c0_i32_1 = arith.constant 0 : i32
    return %c0_i32, %c0_i32_0 : i32, i32
  }
  func.func @transform_8(%arg0: i32) -> (i32, i32) {
    %c0_i32 = arith.constant 0 : i32
    %c0_i32_0 = arith.constant 0 : i32
    return %arg0, %c0_i32 : i32, i32
  }
}

</mosaic_0001>

<llo_original>
// kernel: tpu_custom_call.1
$region0: #{tpu_custom_call.1}
  #allocation0 [shape = 'u32[]', space=smem, size = 0x4, offset = 0x4, fixed_abs, tag = 'smem constant byte address 0x4 - core index']
  #allocation1 [shape = 'u32[72,128]{1,0:T(1,128)}', space=vmem, size = 0x9000, scoped, tag = 'internal scratch']
  %s0 = inlined_call_operand.hbm [shape: bf16[16,32], index: 0, kind: input, shape index: {}]
  %s1 = inlined_call_operand.vmem [shape: f32[2,8,1], index: 1, kind: input, shape index: {}]
  %s2 = inlined_call_operand.vmem [shape: bf16[32,68], index: 2, kind: input, shape index: {}]
  %s3 = inlined_call_operand.vmem [shape: f32[1,68], index: 3, kind: input, shape index: {}]
  %s4 = inlined_call_operand.vmem [shape: bf16[32,4], index: 4, kind: input, shape index: {}]
  %s5 = inlined_call_operand.vmem [shape: f32[1,4], index: 5, kind: input, shape index: {}]
  %s6 = inlined_call_operand.vmem [shape: bf16[32,32], index: 6, kind: input, shape index: {}]
  %s7 = inlined_call_operand.vmem [shape: f32[1,32], index: 7, kind: input, shape index: {}]
  %s8 = inlined_call_operand.hbm [shape: f32[16,32], index: 8, kind: output, shape index: {}]
  %s9 = sld [smem:[#allocation0]]
  $region69: #{tpu_custom_call.1} parent=0
    _
  %s11 = ssub.s32 1, %s9
  %s12 = scalar_select 0, %s11, %s9
  $region1: #{tpu_custom_call.1} parent=0
    #allocation2 [shape = 'u8[4096]{0}', space=vmem, size = 0x1000, scoped, tag = 'input window, operand 0']
    #allocation3 [shape = 's32[2]{0}', space=sflag, size = 0x8, scoped, tag = 'scoped memory for tpu_custom_call.1']
    #allocation4 [shape = 's32[2]{0}', space=sflag, size = 0x8, scoped, tag = 'scoped memory for tpu_custom_call.1']
    #allocation5 [shape = 'u8[8192]{0}', space=vmem, size = 0x2000, scoped, tag = 'output window, operand 0']
    %13 = vsyncpa [#allocation3], 0
    %s14 = scalar_lea.sflag [#allocation3], 1
    %15 = vsyncpa %s14, 0
    %16 = vsyncpa [#allocation4], 0
    %s17 = scalar_lea.sflag [#allocation4], 1
    %18 = vsyncpa %s17, 0
    loop: start=0, step=1, limit=4
    $region2: #{tpu_custom_call.1} parent=1 // loop_pre_header
      _
    $region3: #{tpu_custom_call.1} parent=1 // loop_header
      %s20 = sphi 0, %s24
      %p21 = scmp.ge.s32.totalorder %s20, 4
      %s30 = sphi 0, %s32
      %s33 = sphi 0, %s30
      %s34 = sphi 0, %s33
      %s50 = sphi 0, %s34
      %s56 = sphi 0, %s58
      %s59 = sphi 0, %s56
      %s60 = sphi 0, %s59
      %s76 = sphi 0, %s60
      %s80 = sphi 0, %s80
      %s82 = sphi 0, %s80
      %s83 = sphi 0, %s82
      %s97 = sphi 0, %s83
      %s101 = sphi 0, %s101
      %s103 = sphi 0, %s101
      %s104 = sphi 0, %s103
      %s118 = sphi 0, %s104
      %s122 = sphi 0, %s122
      %s124 = sphi 0, %s122
      %s125 = sphi 0, %s124
      %s139 = sphi 0, %s125
      %s143 = sphi 0, %s143
      %s145 = sphi 0, %s143
      %s146 = sphi 0, %s145
      %s160 = sphi 0, %s146
      %s164 = sphi 0, %s164
      %s166 = sphi 0, %s164
      %s167 = sphi 0, %s166
      %s181 = sphi 0, %s167
      %s185 = sphi 0, %s185
      %s187 = sphi 0, %s185
      %s188 = sphi 0, %s187
      %s202 = sphi 0, %s188
      %s208 = sphi 0, %s210
      %s211 = sphi 0, %s208
      %s212 = sphi 0, %s211
      %s228 = sphi 0, %s212
    $region4: #{tpu_custom_call.1} parent=1 // loop_header_branch
      %23 = sbr.rel (%p21) target = $region8
    $region5: #{tpu_custom_call.1} parent=1 // loop_body
      %s25 = ssub.s32 %s20, 1
      %s26 = ssub.s32 %s20, 2
      %s27 = sadd.s32 %s20, 1
      %s28 = ssub.s32 %s20, %s27
      %p29 = scmp.eq.s32.totalorder %s28, 0
      %s31 = sadd.s32 %s30, 1
      %s32 = scalar_select %p29, %s30, %s31
      %p35 = pneg %p29
      %p36 = scmp.eq.s32.totalorder %s20, 1
      %p37 = por %p35, %p36
      %p38 = scmp.ne.s32.totalorder %s30, %s33
      %p39 = scmp.eq.s32.totalorder %s20, 0
      %p40 = por %p38, %p39
      %p41 = scmp.ne.s32.totalorder %s30, %s33
      %p42 = scmp.eq.s32.totalorder %s25, 1
      %p43 = por %p41, %p42
      %p44 = scmp.ne.s32.totalorder %s33, %s34
      %p45 = scmp.eq.s32.totalorder %s25, 0
      %p46 = por %p44, %p45
      %p47 = scmp.ne.s32.totalorder %s33, %s34
      %p48 = scmp.eq.s32.totalorder %s26, 1
      %p49 = por %p47, %p48
      %p51 = scmp.ne.s32.totalorder %s34, %s50
      %p52 = scmp.eq.s32.totalorder %s26, 0
      %p53 = por %p51, %p52
      %s54 = ssub.s32 %s20, %s27
      %p55 = scmp.eq.s32.totalorder %s54, 0
      %s57 = sadd.s32 %s56, 1
      %s58 = scalar_select %p55, %s56, %s57
      %p61 = pneg %p55
      %p62 = scmp.eq.s32.totalorder %s20, 1
      %p63 = por %p61, %p62
      %p64 = scmp.ne.s32.totalorder %s56, %s59
      %p65 = scmp.eq.s32.totalorder %s20, 0
      %p66 = por %p64, %p65
      %p67 = scmp.ne.s32.totalorder %s56, %s59
      %p68 = scmp.eq.s32.totalorder %s25, 1
      %p69 = por %p67, %p68
      %p70 = scmp.ne.s32.totalorder %s59, %s60
      %p71 = scmp.eq.s32.totalorder %s25, 0
      %p72 = por %p70, %p71
      %p73 = scmp.ne.s32.totalorder %s59, %s60
      %p74 = scmp.eq.s32.totalorder %s26, 1
      %p75 = por %p73, %p74
      %p77 = scmp.ne.s32.totalorder %s60, %s76
      %p78 = scmp.eq.s32.totalorder %s26, 0
      %p79 = por %p77, %p78
      %s81 = sadd.s32 %s80, 1
      %p84 = scmp.eq.s32.totalorder %s20, 1
      %p85 = scmp.ne.s32.totalorder %s80, %s82
      %p86 = scmp.eq.s32.totalorder %s20, 0
      %p87 = por %p85, %p86
      %p88 = scmp.ne.s32.totalorder %s80, %s82
      %p89 = scmp.eq.s32.totalorder %s25, 1
      %p90 = por %p88, %p89
      %p91 = scmp.ne.s32.totalorder %s82, %s83
      %p92 = scmp.eq.s32.totalorder %s25, 0
      %p93 = por %p91, %p92
      %p94 = scmp.ne.s32.totalorder %s82, %s83
      %p95 = scmp.eq.s32.totalorder %s26, 1
      %p96 = por %p94, %p95
      %p98 = scmp.ne.s32.totalorder %s83, %s97
      %p99 = scmp.eq.s32.totalorder %s26, 0
      %p100 = por %p98, %p99
      %s102 = sadd.s32 %s101, 1
      %p105 = scmp.eq.s32.totalorder %s20, 1
      %p106 = scmp.ne.s32.totalorder %s101, %s103
      %p107 = scmp.eq.s32.totalorder %s20, 0
      %p108 = por %p106, %p107
      %p109 = scmp.ne.s32.totalorder %s101, %s103
      %p110 = scmp.eq.s32.totalorder %s25, 1
      %p111 = por %p109, %p110
      %p112 = scmp.ne.s32.totalorder %s103, %s104
      %p113 = scmp.eq.s32.totalorder %s25, 0
      %p114 = por %p112, %p113
      %p115 = scmp.ne.s32.totalorder %s103, %s104
      %p116 = scmp.eq.s32.totalorder %s26, 1
      %p117 = por %p115, %p116
      %p119 = scmp.ne.s32.totalorder %s104, %s118
      %p120 = scmp.eq.s32.totalorder %s26, 0
      %p121 = por %p119, %p120
      %s123 = sadd.s32 %s122, 1
      %p126 = scmp.eq.s32.totalorder %s20, 1
      %p127 = scmp.ne.s32.totalorder %s122, %s124
      %p128 = scmp.eq.s32.totalorder %s20, 0
      %p129 = por %p127, %p128
      %p130 = scmp.ne.s32.totalorder %s122, %s124
      %p131 = scmp.eq.s32.totalorder %s25, 1
      %p132 = por %p130, %p131
      %p133 = scmp.ne.s32.totalorder %s124, %s125
      %p134 = scmp.eq.s32.totalorder %s25, 0
      %p135 = por %p133, %p134
      %p136 = scmp.ne.s32.totalorder %s124, %s125
      %p137 = scmp.eq.s32.totalorder %s26, 1
      %p138 = por %p136, %p137
      %p140 = scmp.ne.s32.totalorder %s125, %s139
      %p141 = scmp.eq.s32.totalorder %s26, 0
      %p142 = por %p140, %p141
      %s144 = sadd.s32 %s143, 1
      %p147 = scmp.eq.s32.totalorder %s20, 1
      %p148 = scmp.ne.s32.totalorder %s143, %s145
      %p149 = scmp.eq.s32.totalorder %s20, 0
      %p150 = por %p148, %p149
      %p151 = scmp.ne.s32.totalorder %s143, %s145
      %p152 = scmp.eq.s32.totalorder %s25, 1
      %p153 = por %p151, %p152
      %p154 = scmp.ne.s32.totalorder %s145, %s146
      %p155 = scmp.eq.s32.totalorder %s25, 0
      %p156 = por %p154, %p155
      %p157 = scmp.ne.s32.totalorder %s145, %s146
      %p158 = scmp.eq.s32.totalorder %s26, 1
      %p159 = por %p157, %p158
      %p161 = scmp.ne.s32.totalorder %s146, %s160
      %p162 = scmp.eq.s32.totalorder %s26, 0
      %p163 = por %p161, %p162
      %s165 = sadd.s32 %s164, 1
      %p168 = scmp.eq.s32.totalorder %s20, 1
      %p169 = scmp.ne.s32.totalorder %s164, %s166
      %p170 = scmp.eq.s32.totalorder %s20, 0
      %p171 = por %p169, %p170
      %p172 = scmp.ne.s32.totalorder %s164, %s166
      %p173 = scmp.eq.s32.totalorder %s25, 1
      %p174 = por %p172, %p173
      %p175 = scmp.ne.s32.totalorder %s166, %s167
      %p176 = scmp.eq.s32.totalorder %s25, 0
      %p177 = por %p175, %p176
      %p178 = scmp.ne.s32.totalorder %s166, %s167
      %p179 = scmp.eq.s32.totalorder %s26, 1
      %p180 = por %p178, %p179
      %p182 = scmp.ne.s32.totalorder %s167, %s181
      %p183 = scmp.eq.s32.totalorder %s26, 0
      %p184 = por %p182, %p183
      %s186 = sadd.s32 %s185, 1
      %p189 = scmp.eq.s32.totalorder %s20, 1
      %p190 = scmp.ne.s32.totalorder %s185, %s187
      %p191 = scmp.eq.s32.totalorder %s20, 0
      %p192 = por %p190, %p191
      %p193 = scmp.ne.s32.totalorder %s185, %s187
      %p194 = scmp.eq.s32.totalorder %s25, 1
      %p195 = por %p193, %p194
      %p196 = scmp.ne.s32.totalorder %s187, %s188
      %p197 = scmp.eq.s32.totalorder %s25, 0
      %p198 = por %p196, %p197
      %p199 = scmp.ne.s32.totalorder %s187, %s188
      %p200 = scmp.eq.s32.totalorder %s26, 1
      %p201 = por %p199, %p200
      %p203 = scmp.ne.s32.totalorder %s188, %s202
      %p204 = scmp.eq.s32.totalorder %s26, 0
      %p205 = por %p203, %p204
      %s206 = ssub.s32 %s20, %s27
      %p207 = scmp.eq.s32.totalorder %s206, 0
      %s209 = sadd.s32 %s208, 1
      %s210 = scalar_select %p207, %s208, %s209
      %p213 = pneg %p207
      %p214 = scmp.eq.s32.totalorder %s20, 1
      %p215 = por %p213, %p214
      %p216 = scmp.ne.s32.totalorder %s208, %s211
      %p217 = scmp.eq.s32.totalorder %s20, 0
      %p218 = por %p216, %p217
      %p219 = scmp.ne.s32.totalorder %s208, %s211
      %p220 = scmp.eq.s32.totalorder %s25, 1
      %p221 = por %p219, %p220
      %p222 = scmp.ne.s32.totalorder %s211, %s212
      %p223 = scmp.eq.s32.totalorder %s25, 0
      %p224 = por %p222, %p223
      %p225 = scmp.ne.s32.totalorder %s211, %s212
      %p226 = scmp.eq.s32.totalorder %s26, 1
      %p227 = por %p225, %p226
      %p229 = scmp.ne.s32.totalorder %s212, %s228
      %p230 = scmp.eq.s32.totalorder %s26, 0
      %p231 = por %p229, %p230
      %p232 = scmp.le.s32.totalorder 1, %s20
      %p233 = scmp.lt.s32.totalorder %s20, 3
      %p234 = pnand %p232, %p233
      %p235 = pneg %p234
      // Predicated region
      $region9: #{tpu_custom_call.1} parent=5 // pred_check
        _
      $region10: #{tpu_custom_call.1} parent=5 // pred_check_branch
        %237 = sbr.rel (%p234) target = $region12
      $region11: #{tpu_custom_call.1} parent=5 // pred_region
        %s238 = ssub.s32 %s20, 1
        // Predicated region
        $region13: #{tpu_custom_call.1} parent=11 // pred_check
          %p239 = pneg %p93
        $region14: #{tpu_custom_call.1} parent=11 // pred_check_branch
          %241 = sbr.rel (%p239) target = $region16
        $region15: #{tpu_custom_call.1} parent=11 // pred_region
          _
        $region16: #{tpu_custom_call.1} parent=11 // pred_fallthru
          _
        // Predicated region
        $region17: #{tpu_custom_call.1} parent=11 // pred_check
          %p242 = pneg %p114
        $region18: #{tpu_custom_call.1} parent=11 // pred_check_branch
          %244 = sbr.rel (%p242) target = $region20
        $region19: #{tpu_custom_call.1} parent=11 // pred_region
          _
        $region20: #{tpu_custom_call.1} parent=11 // pred_fallthru
          _
        // Predicated region
        $region21: #{tpu_custom_call.1} parent=11 // pred_check
          %p245 = pneg %p135
        $region22: #{tpu_custom_call.1} parent=11 // pred_check_branch
          %247 = sbr.rel (%p245) target = $region24
        $region23: #{tpu_custom_call.1} parent=11 // pred_region
          _
        $region24: #{tpu_custom_call.1} parent=11 // pred_fallthru
          _
        // Predicated region
        $region25: #{tpu_custom_call.1} parent=11 // pred_check
          %p248 = pneg %p156
        $region26: #{tpu_custom_call.1} parent=11 // pred_check_branch
          %250 = sbr.rel (%p248) target = $region28
        $region27: #{tpu_custom_call.1} parent=11 // pred_region
          _
        $region28: #{tpu_custom_call.1} parent=11 // pred_fallthru
          _
        // Predicated region
        $region29: #{tpu_custom_call.1} parent=11 // pred_check
          %p251 = pneg %p177
        $region30: #{tpu_custom_call.1} parent=11 // pred_check_branch
          %253 = sbr.rel (%p251) target = $region32
        $region31: #{tpu_custom_call.1} parent=11 // pred_region
          _
        $region32: #{tpu_custom_call.1} parent=11 // pred_fallthru
          _
        // Predicated region
        $region33: #{tpu_custom_call.1} parent=11 // pred_check
          %p254 = pneg %p198
        $region34: #{tpu_custom_call.1} parent=11 // pred_check_branch
          %256 = sbr.rel (%p254) target = $region36
        $region35: #{tpu_custom_call.1} parent=11 // pred_region
          _
        $region36: #{tpu_custom_call.1} parent=11 // pred_fallthru
          _
      $region12: #{tpu_custom_call.1} parent=5 // pred_fallthru
        _
      %p257 = scmp.lt.s32.totalorder %s20, 2
      // Predicated region
      $region37: #{tpu_custom_call.1} parent=5 // pred_check
        %p258 = pneg %p257
      $region38: #{tpu_custom_call.1} parent=5 // pred_check_branch
        %260 = sbr.rel (%p258) target = $region40
      $region39: #{tpu_custom_call.1} parent=5 // pred_region
        // Predicated region
        $region41: #{tpu_custom_call.1} parent=39 // pred_check
          %p261 = pneg %p40
        $region42: #{tpu_custom_call.1} parent=39 // pred_check_branch
          %263 = sbr.rel (%p261) target = $region44
        $region43: #{tpu_custom_call.1} parent=39 // pred_region
          %s264 = sand.u32 %s30, 1
          %s265 = scalar_lea.sflag [#allocation3], %s264
          %s266 = sand.u32 %s30, 1
          %s267 = smul.addr %s266, 4
          %s268 = scalar_lea.vmem [#allocation2], %s267
          %270 = vsyncadd %s265, 0
          %s271 = smul.addr %s20, 4
          %s272 = scalar_lea.hbm %s0, %s271
          %s274 = sshll.u32 %s272, 4
          %s275 = int_to_ptr.hbm [resolvable:$true] %s274
          %s276 = sshll.u32 %s268, 4
          %s277 = int_to_ptr.vmem [resolvable:$true] %s276
          %279 = dma.hbm_to_vmem [thread:$0]  %s275, 64, %s277, %s265
        $region44: #{tpu_custom_call.1} parent=39 // pred_fallthru
          _
        // Predicated region
        $region45: #{tpu_custom_call.1} parent=39 // pred_check
          %p280 = pneg %p66
        $region46: #{tpu_custom_call.1} parent=39 // pred_check_branch
          %282 = sbr.rel (%p280) target = $region48
        $region47: #{tpu_custom_call.1} parent=39 // pred_region
          %p283 = scmp.lt.s32.totalorder %s20, 1
          %s284 = scalar_select %p283, %s20, 1
          %s285 = smul.addr %s284, 8
          %s286 = scalar_lea.vmem %s1, %s285
        $region48: #{tpu_custom_call.1} parent=39 // pred_fallthru
          _
      $region40: #{tpu_custom_call.1} parent=5 // pred_fallthru
        _
      %p287 = scmp.le.s32.totalorder 1, %s20
      %p288 = scmp.lt.s32.totalorder %s20, 3
      %p289 = pnand %p287, %p288
      %p290 = pneg %p289
      // Predicated region
      $region49: #{tpu_custom_call.1} parent=5 // pred_check
        _
      $region50: #{tpu_custom_call.1} parent=5 // pred_check_branch
        %292 = sbr.rel (%p289) target = $region52
      $region51: #{tpu_custom_call.1} parent=5 // pred_region
        %s293 = ssub.s32 %s20, 1
        %s294 = sand.u32 %s33, 1
        %s295 = scalar_lea.sflag [#allocation3], %s294
        %s296 = sand.u32 %s33, 1
        %s297 = smul.addr %s296, 4
        %s298 = scalar_lea.vmem [#allocation2], %s297
        // Predicated region
        $region53: #{tpu_custom_call.1} parent=51 // pred_check
          %p299 = pneg %p46
        $region54: #{tpu_custom_call.1} parent=51 // pred_check_branch
          %301 = sbr.rel (%p299) target = $region56
        $region55: #{tpu_custom_call.1} parent=51 // pred_region
          %303 = dma.done %s295, 64
        $region56: #{tpu_custom_call.1} parent=51 // pred_fallthru
          _
        %s304 = sand.u32 %s33, 1
        %s305 = scalar_lea.sflag [#allocation3], %s304
        %s306 = sand.u32 %s33, 1
        %s307 = smul.addr %s306, 4
        %s308 = scalar_lea.vmem [#allocation2], %s307
        %p309 = pneg %p46
        %p310 = pneg %p43
        %p311 = scmp.lt.s32.totalorder %s25, 1
        %s312 = scalar_select %p311, %s25, 1
        %s313 = smul.addr %s312, 8
        %s314 = scalar_lea.vmem %s1, %s313
        %p315 = pneg %p72
        %p316 = pneg %p69
        %p317 = pneg %p93
        %p318 = pneg %p90
        %p319 = pneg %p114
        %p320 = pneg %p111
        %p321 = pneg %p135
        %p322 = pneg %p132
        %p323 = pneg %p156
        %p324 = pneg %p153
        %p325 = pneg %p177
        %p326 = pneg %p174
        %p327 = pneg %p198
        %p328 = pneg %p195
        %p329 = pneg %p224
        %p330 = pneg %p221
        %s331 = sand.u32 %s211, 1
        %s332 = scalar_lea.sflag [#allocation4], %s331
        %s333 = sand.u32 %s211, 1
        %s334 = smul.addr %s333, 8
        %s335 = scalar_lea.vmem [#allocation5], %s334
        %p336 = scmp.lt.s32.totalorder %s25, 1
        %s337 = scalar_select %p336, %s25, 1
        %s338 = smul.addr %s337, 8
        %s339 = scalar_lea.vmem %s1, %s338
        %v341 = vld [vmem:[%s298] sm:$0xf]
        %v342 = vld [vmem:[%s339] sm:$0xff]
        %v343 = vlaneseq
        %v344 = vand.u32 %v343, 127
        %v345 = vlaneseq
        %v346 = vshrl.u32 %v345, 7
        %v347 = vmul.u32 %v346, 8
        %vm348 = vcmp.ge.s32.totalorder %v344, %v347
        %v349 = vadd.s32 %v347, 8
        %vm350 = vcmp.lt.s32.totalorder %v344, %v349
        %vm351 = vmand %vm348, %vm350
        %v352 = vsel %vm351, 1, 0
        %v353 = vcvt.s32.f32 %v352
        %v354 = vpack.c.bf16 %v353, %v353
        %v355 = vld [vmem:[%s2] sm:$0xf]
        %v356 = vld [vmem:[%s2 + $0x4] sm:$0xf]
        %v357 = vld [vmem:[%s2 + $0x8] sm:$0xf]
        %v358 = vld [vmem:[%s2 + $0xc] sm:$0xf]
        %v359 = vld [vmem:[%s3] sm:$0x1]
        %v361 = vperm.slane %v359, 0
        %v367 = vunpack.c.l.b16 %v355
        %v368 = vunpack.c.l.b16 %v356
        %v369 = vunpack.c.l.b16 %v357
        %v370 = vunpack.c.l.b16 %v358
        %v371 = vpack.c.b16 %v368, %v367
        %v372 = vpack.c.b16 %v370, %v369
        %vm375 = vcmask 261120
        %v377 = vsel %vm375, %v341, 0
        %379 = vmatpush.bf16.msra.mxu0 0
        %380 = vmatpush.bf16.msra.mxu0 0
        %381 = vmatpush.bf16.msra.mxu0 0
        %382 = vmatpush.bf16.msra.mxu0 0
        %383 = vmatpush.bf16.msra.mxu0 0
        %384 = vmatpush.bf16.msra.mxu0 0
        %385 = vmatpush.bf16.msra.mxu0 %v372
        %386 = vmatpush.bf16.msra.mxu0 %v371
        %387 = vmatmul.bf16.gmra.mxu0 %v377
        %v388 = vpop.f32.mrf.mxu0
        %v389 = vadd.f32 %v361, %v388
        %v390 = vpop.f32.mrf.mxu0
        %391 = vdwg.mxu0
        %393 = vset.pattern.permute.xlu0 0
        %394 = vperm.xlu0 %393, %v342
        %v395 = vpop.permute.xlu0 %394
        %v397 = vadd.f32 %v389, %v395
        %vm398 = vcmask 556544
        %v399 = vsel %vm398, %v397, -inf
        %v400 = vrot.slane %v399, 4
        %v401 = vmax.f32 %v399, %v400
        %v402 = vrot.slane %v401, 2
        %v403 = vmax.f32 %v401, %v402
        %v404 = vrot.slane %v403, 1
        %v405 = vmax.f32 %v403, %v404
        %v406 = vsub.f32 %v397, %v405
        %v407 = vmul.f32 %v406, 1.442695
        %v408 = vpow.pop %v407
        %v409 = vsel %vm398, %v408, 0.0
        %v410 = vrot.slane %v409, 4
        %v411 = vadd.f32 %v409, %v410
        %v412 = vrot.slane %v411, 2
        %v413 = vadd.f32 %v411, %v412
        %v414 = vrot.slane %v413, 1
        %v415 = vadd.f32 %v413, %v414
        %v416 = vrcp.pop %v415
        %v417 = vmul.f32 %v408, %v416
        %v418 = vpack.c.bf16 %v417, %v417
        %420 = vrot.lane.b32.xlu0 %v418, 64
        %v421 = vpop.permute.xlu0 %420
        %vm422 = vcmask 31744
        %v424 = vsel %vm422, %v421, 0
        %vm426 = vcmask 1041408
        %v428 = vsel %vm426, %v354, 0
        %430 = vmatpush.bf16.msra.mxu0 0
        %431 = vmatpush.bf16.msra.mxu0 0
        %432 = vmatpush.bf16.msra.mxu0 0
        %433 = vmatpush.bf16.msra.mxu0 0
        %434 = vmatpush.bf16.msra.mxu0 0
        %435 = vmatpush.bf16.msra.mxu0 0
        %436 = vmatpush.bf16.msra.mxu0 0
        %437 = vmatpush.bf16.msra.mxu0 %v428
        %438 = vmatmul.bf16.gmra.mxu0 %v424
        %v439 = vpop.f32.mrf.mxu0
        %v440 = vadd.f32 0.0, %v439
        %v441 = vpop.f32.mrf.mxu0
        %442 = vdwg.mxu0
        %v443 = vmul.f32 %v440, %v389
        %v444 = vsel %vm375, %v443, 0.0
        %v445 = vrot.slane %v444, 4
        %v446 = vadd.f32 %v444, %v445
        %v447 = vrot.slane %v446, 2
        %v448 = vadd.f32 %v446, %v447
        %v449 = vrot.slane %v448, 1
        %v450 = vadd.f32 %v448, %v449
        %452 = vrot.lane.b32.xlu0 %v450, 32
        %v453 = vpop.permute.xlu0 %452
        %v455 = vmul.f32 %v389, %v453
        %v456 = vpack.c.bf16 %v455, %v455
        %v457 = vld [vmem:[%s4] sm:$0xf]
        %v458 = vld [vmem:[%s4 + $0x4] sm:$0xf]
        %v459 = vld [vmem:[%s4 + $0x8] sm:$0xf]
        %v460 = vld [vmem:[%s4 + $0xc] sm:$0xf]
        %v461 = vld [vmem:[%s5] sm:$0x1]
        %v463 = vperm.slane %v461, 0
        %466 = vrot.lane.b32.xlu0 %v456, 96
        %v467 = vpop.permute.xlu0 %466
        %v472 = vunpack.c.l.b16 %v457
        %v473 = vunpack.c.l.b16 %v458
        %v474 = vunpack.c.l.b16 %v459
        %v475 = vunpack.c.l.b16 %v460
        %v476 = vpack.c.b16 %v473, %v472
        %v477 = vpack.c.b16 %v475, %v474
        %v481 = vsel %vm375, %v467, 0
        %483 = vmatpush.bf16.msra.mxu0 0
        %484 = vmatpush.bf16.msra.mxu0 0
        %485 = vmatpush.bf16.msra.mxu0 0
        %486 = vmatpush.bf16.msra.mxu0 0
        %487 = vmatpush.bf16.msra.mxu0 0
        %488 = vmatpush.bf16.msra.mxu0 0
        %489 = vmatpush.bf16.msra.mxu0 %v477
        %490 = vmatpush.bf16.msra.mxu0 %v476
        %491 = vmatmul.bf16.gmra.mxu0 %v481
        %v492 = vpop.f32.mrf.mxu0
        %v493 = vadd.f32 %v463, %v492
        %v494 = vpop.f32.mrf.mxu0
        %495 = vdwg.mxu0
        %v496 = vadd.f32 %v493, %v395
        %v497 = vsel %vm422, %v496, -inf
        %v498 = vrot.slane %v497, 4
        %v499 = vmax.f32 %v497, %v498
        %v500 = vrot.slane %v499, 2
        %v501 = vmax.f32 %v499, %v500
        %v502 = vrot.slane %v501, 1
        %v503 = vmax.f32 %v501, %v502
        %v504 = vsub.f32 %v496, %v503
        %v505 = vmul.f32 %v504, 1.442695
        %v506 = vpow.pop %v505
        %v507 = vsel %vm422, %v506, 0.0
        %v508 = vrot.slane %v507, 4
        %v509 = vadd.f32 %v507, %v508
        %v510 = vrot.slane %v509, 2
        %v511 = vadd.f32 %v509, %v510
        %v512 = vrot.slane %v511, 1
        %v513 = vadd.f32 %v511, %v512
        %v514 = vrcp.pop %v513
        %v515 = vmul.f32 %v506, %v514
        %v516 = vpack.c.bf16 %v515, %v515
        %v518 = vsel %vm422, %v516, 0
        %520 = vmatpush.bf16.msra.mxu0 0
        %521 = vmatpush.bf16.msra.mxu0 0
        %522 = vmatpush.bf16.msra.mxu0 0
        %523 = vmatpush.bf16.msra.mxu0 0
        %524 = vmatpush.bf16.msra.mxu0 0
        %525 = vmatpush.bf16.msra.mxu0 0
        %526 = vmatpush.bf16.msra.mxu0 0
        %527 = vmatpush.bf16.msra.mxu0 %v428
        %528 = vmatmul.bf16.gmra.mxu0 %v518
        %v529 = vpop.f32.mrf.mxu0
        %v530 = vadd.f32 0.0, %v529
        %v531 = vpop.f32.mrf.mxu0
        %532 = vdwg.mxu0
        %534 = vrot.lane.b32.xlu0 %v455, 96
        %v535 = vpop.permute.xlu0 %534
        %v537 = vmul.f32 %v530, %v535
        %v538 = vsel %vm375, %v537, 0.0
        %v539 = vrot.slane %v538, 4
        %v540 = vadd.f32 %v538, %v539
        %v541 = vrot.slane %v540, 2
        %v542 = vadd.f32 %v540, %v541
        %v543 = vrot.slane %v542, 1
        %v544 = vadd.f32 %v542, %v543
        %v545 = vmul.f32 %v544, %v389
        %v546 = vpack.c.bf16 %v545, %v545
        %v547 = vld [vmem:[%s6] sm:$0xf]
        %v548 = vld [vmem:[%s6 + $0x4] sm:$0xf]
        %v549 = vld [vmem:[%s6 + $0x8] sm:$0xf]
        %v550 = vld [vmem:[%s6 + $0xc] sm:$0xf]
        %v551 = vld [vmem:[%s7] sm:$0x1]
        %v553 = vperm.slane %v551, 0
        %v559 = vunpack.c.l.b16 %v547
        %v560 = vunpack.c.l.b16 %v548
        %v561 = vunpack.c.l.b16 %v549
        %v562 = vunpack.c.l.b16 %v550
        %v563 = vpack.c.b16 %v560, %v559
        %v564 = vpack.c.b16 %v562, %v561
        %v568 = vsel %vm375, %v546, 0
        %570 = vmatpush.bf16.msra.mxu0 0
        %571 = vmatpush.bf16.msra.mxu0 0
        %572 = vmatpush.bf16.msra.mxu0 0
        %573 = vmatpush.bf16.msra.mxu0 0
        %574 = vmatpush.bf16.msra.mxu0 0
        %575 = vmatpush.bf16.msra.mxu0 0
        %576 = vmatpush.bf16.msra.mxu0 %v564
        %577 = vmatpush.bf16.msra.mxu0 %v563
        %578 = vmatmul.bf16.gmra.mxu0 %v568
        %v579 = vpop.f32.mrf.mxu0
        %v580 = vadd.f32 %v553, %v579
        %v581 = vpop.f32.mrf.mxu0
        %582 = vdwg.mxu0
        %v583 = vadd.f32 %v580, %v389
        %584 = vst.msk [vmem:[%s335] sm:$0xff] %vm375, %v583
        %s585 = sand.u32 %s211, 1
        %s586 = scalar_lea.sflag [#allocation4], %s585
        %s587 = sand.u32 %s211, 1
        %s588 = smul.addr %s587, 8
        %s589 = scalar_lea.vmem [#allocation5], %s588
        // Predicated region
        $region57: #{tpu_custom_call.1} parent=51 // pred_check
          %p590 = pneg %p221
        $region58: #{tpu_custom_call.1} parent=51 // pred_check_branch
          %592 = sbr.rel (%p590) target = $region60
        $region59: #{tpu_custom_call.1} parent=51 // pred_region
          %594 = vsyncadd %s586, 0
          %s595 = smul.addr %s25, 8
          %s596 = scalar_lea.hbm %s8, %s595
          %s598 = sshll.u32 %s589, 4
          %s599 = int_to_ptr.vmem [resolvable:$true] %s598
          %s600 = sshll.u32 %s596, 4
          %s601 = int_to_ptr.hbm [resolvable:$true] %s600
          %603 = dma.vmem_to_hbm [thread:$0]  %s599, 128, %s601, %s586
        $region60: #{tpu_custom_call.1} parent=51 // pred_fallthru
          _
      $region52: #{tpu_custom_call.1} parent=5 // pred_fallthru
        _
      %p604 = scmp.le.s32.totalorder 2, %s20
      // Predicated region
      $region61: #{tpu_custom_call.1} parent=5 // pred_check
        %p605 = pneg %p604
      $region62: #{tpu_custom_call.1} parent=5 // pred_check_branch
        %607 = sbr.rel (%p605) target = $region64
      $region63: #{tpu_custom_call.1} parent=5 // pred_region
        %s608 = ssub.s32 %s20, 2
        // Predicated region
        $region65: #{tpu_custom_call.1} parent=63 // pred_check
          %p609 = pneg %p227
        $region66: #{tpu_custom_call.1} parent=63 // pred_check_branch
          %611 = sbr.rel (%p609) target = $region68
        $region67: #{tpu_custom_call.1} parent=63 // pred_region
          %s612 = sand.u32 %s212, 1
          %s613 = scalar_lea.sflag [#allocation4], %s612
          %s614 = sand.u32 %s212, 1
          %s615 = smul.addr %s614, 8
          %s616 = scalar_lea.vmem [#allocation5], %s615
          %618 = dma.done %s613, 128
        $region68: #{tpu_custom_call.1} parent=63 // pred_fallthru
          _
      $region64: #{tpu_custom_call.1} parent=5 // pred_fallthru
        _
    $region6: #{tpu_custom_call.1} parent=1 // loop_footer
      %s24 = sadd.s32 1, %s20
    $region7: #{tpu_custom_call.1} parent=1 // loop_footer_branch
      %19 = sbr.rel target = $region3
    $region8: #{tpu_custom_call.1} parent=1 // loop_exit
      _
    %619 = vsyncpa [#allocation3], 1
    %s620 = scalar_lea.sflag [#allocation3], 1
    %621 = vsyncpa %s620, 1
    %622 = vsyncpa [#allocation4], 1
    %s623 = scalar_lea.sflag [#allocation4], 1
    %624 = vsyncpa %s623, 1

</llo_original>
